<compile_context>
chip_gen: v7x
topology: tpu7x:2x2x1
jax: 0.10.0
libtpu: 0.0.40
codegen_flags: <defaults>
</compile_context>

<pallas_src>
import functools

import jax
import jax.numpy as jnp
from jax import lax
from jax.experimental import pallas as pl
from jax.experimental.pallas import tpu as pltpu


def _conv1d_k3_kernel(*refs, use_halo: bool, lane_chunk: int):
    """One (batch block, L tile) per grid step.

    refs (in order):
      [halo_ref] (N*nt*2,)  SMEM  channel sums of the columns just outside each
                                  L tile (only present when use_halo)
      x_ref      (BN, C, TL) VMEM input tile
      o_ref      (BN, C, TL) VMEM output tile
      s_ref      (1, TL+256) VMEM scratch row:
                                  [128-lane left-halo group | channel sums S[l] |
                                   128-lane right-halo group]
    """
    if use_halo:
        halo_ref, x_ref, o_ref, s_ref = refs
    else:
        x_ref, o_ref, s_ref = refs

    BN, C, TL = x_ref.shape
    LC = lane_chunk
    n_lc = TL // LC
    PAD = 128

    # Halo channel sums for this tile (Conv1d zero padding at sequence edges).
    if use_halo:  # BN == 1 on this path (enforced by the wrapper)
        base = (pl.program_id(0) * pl.num_programs(1) + pl.program_id(1)) * 2
        left_h = halo_ref[base]
        right_h = halo_ref[base + 1]
    else:
        left_h = jnp.float32(0.0)
        right_h = jnp.float32(0.0)

    # Fill the halo lane groups once per block; only lane PAD-1 (left) and lane
    # PAD+TL (right) are actually read by the stencil.
    s_ref[:, pl.ds(0, PAD)] = jnp.full((1, PAD), left_h, jnp.float32)
    s_ref[:, pl.ds(PAD + TL, PAD)] = jnp.full((1, PAD), right_h, jnp.float32)

    def row_body(b, carry):
        # --- phase 1: channel sum S[l] into the scratch row (f32 accumulation) ---
        def sum_chunk(ci, c):
            c0 = pl.multiple_of(ci * LC, 128)
            acc = jnp.zeros((1, LC), jnp.float32)
            for cs in range(0, C, 32):          # static chunking bounds vregs
                cw = min(32, C - cs)
                acc = acc + jnp.sum(
                    x_ref[b, cs:cs + cw, pl.ds(c0, LC)].astype(jnp.float32),
                    axis=0, keepdims=True)
            s_ref[:, pl.ds(PAD + c0, LC)] = acc
            return c

        lax.fori_loop(0, n_lc, sum_chunk, 0, unroll=n_lc <= 8)

        # --- phase 2: 3-tap stencil + channel-replicated stores ---
        def stencil_chunk(ci, c):
            c0 = pl.multiple_of(ci * LC, 128)
            # Aligned load of the chunk plus one 128-lane group on each side, so
            # the +/-1 neighbours are static slices (no unaligned dynamic loads).
            w = s_ref[:, pl.ds(c0, LC + 2 * PAD)]
            center = w[:, PAD:PAD + LC]
            left = w[:, PAD - 1:PAD - 1 + LC]
            right = w[:, PAD + 1:PAD + 1 + LC]
            # Hard-coded ConvBlock taps [-1, 2, -1], identical for every channel pair.
            y = (2.0 * center - left - right).astype(o_ref.dtype)
            for cs in range(0, C, 8):           # <=8-sublane replicated stores
                cw = min(8, C - cs)
                o_ref[b, cs:cs + cw, pl.ds(c0, LC)] = jnp.broadcast_to(y, (cw, LC))
            return c

        lax.fori_loop(0, n_lc, stencil_chunk, 0, unroll=n_lc <= 8)
        return carry

    lax.fori_loop(0, BN, row_body, 0, unroll=BN <= 4)


def conv_block(x, *, block_budget_bytes=None):
    """x: (N, C, L) -> (N, C, L); matches ConvBlock.forward (taps [-1, 2, -1]).

    bf16 inputs are accepted (channel sums accumulate in f32 inside the kernel);
    keep f32 for exact parity with the torch module.
    """
    N, C, L = x.shape
    itemsize = jnp.dtype(x.dtype).itemsize

    # Lane-dense L: pad up to a multiple of 128 (avoids masked vst.msk partial
    # stores); padded zero columns reproduce the Conv1d zero padding and the extra
    # output columns are sliced off below.
    L_pad = ((L + 127) // 128) * 128
    if L_pad != L:
        x = jnp.pad(x, ((0, 0), (0, 0), (0, L_pad - L)))

    # Device-derived budgets: v5e/v6e have 128 MiB VMEM, v7x has 64 MiB per core.
    try:
        vmem_cap = int(pltpu.get_tpu_info().vmem_capacity_bytes)
    except Exception:
        vmem_cap = 64 << 20  # conservative fallback (v7x per-core capacity)
    if block_budget_bytes is None:
        block_budget_bytes = min(vmem_cap // 16, 8 << 20)

    row_bytes = C * L_pad * itemsize
    if row_bytes <= block_budget_bytes:
        # Whole (padded) L per block; batch-block so each grid step moves a useful
        # amount of data even for small C (per-step overhead ~0.35 us otherwise).
        TL, nt = L_pad, 1
        bn_cap = max(1, block_budget_bytes // row_bytes)
        if N >= 2:
            bn_cap = min(bn_cap, max(1, N // 2))   # keep >=2 grid steps
        BN = 1
        for d in range(min(bn_cap, N), 0, -1):
            if N % d == 0:
                BN = d
                break
    else:
        # Very long L: tile L (BN=1) and exchange 1-column halos via SMEM.
        BN = 1
        tl_cap = max(128, (block_budget_bytes // (C * itemsize)) // 128 * 128)
        TL = min(L_pad, tl_cap)
        while L_pad % TL:
            TL -= 128
        nt = L_pad // TL
    nb = N // BN

    # In-kernel lane chunk: decouples DMA block size from vector width so live
    # (1, LC) temporaries stay a handful of vregs regardless of TL.
    LC = min(TL, 512)
    while TL % LC:
        LC -= 128

    use_halo = nt > 1
    operands = []
    in_specs = []
    if use_halo:
        # Channel sums of the single column just left/right of every interior tile
        # boundary (sequence edges stay 0 == Conv1d zero padding).  Flat SMEM table:
        # pads to next_pow2(4*N*nt*2) bytes — tiny for any realistic N*nt since this
        # path only triggers for very long L.
        hs = jnp.zeros((N, nt, 2), jnp.float32)
        left_cols = x[:, :, TL - 1:L_pad - 1:TL]     # cols j*TL-1,   j = 1..nt-1
        right_cols = x[:, :, TL:L_pad:TL]            # cols (j+1)*TL, j = 0..nt-2
        hs = hs.at[:, 1:, 0].set(jnp.sum(left_cols, axis=1, dtype=jnp.float32))
        hs = hs.at[:, :-1, 1].set(jnp.sum(right_cols, axis=1, dtype=jnp.float32))
        operands.append(hs.reshape(-1))
        in_specs.append(pl.BlockSpec(memory_space=pltpu.MemorySpace.SMEM))
    operands.append(x)
    in_specs.append(pl.BlockSpec((BN, C, TL), lambda n, j: (n, 0, j)))

    block_bytes = BN * C * TL * itemsize
    vmem_limit = int(min(max(4 * block_bytes + 4 * (TL + 256) + (2 << 20), 32 << 20),
                         vmem_cap * 3 // 4))

    kernel = functools.partial(_conv1d_k3_kernel, use_halo=use_halo, lane_chunk=LC)
    out = pl.pallas_call(
        kernel,
        out_shape=jax.ShapeDtypeStruct((N, C, L_pad), x.dtype),
        grid=(nb, nt),
        in_specs=in_specs,
        out_specs=pl.BlockSpec((BN, C, TL), lambda n, j: (n, 0, j)),
        scratch_shapes=[pltpu.VMEM((1, TL + 256), jnp.float32)],
        compiler_params=pltpu.CompilerParams(
            dimension_semantics=("parallel", "parallel"),
            vmem_limit_bytes=vmem_limit,
        ),
    )(*operands)

    if L_pad != L:
        out = out[:, :, :L]
    return out


def make_weights(num_ch):
    # ConvBlock.__init__ overwrites the entire kernel dim deterministically.
    w = jnp.zeros((num_ch, num_ch, 3), dtype=jnp.float32)
    w = w.at[..., 0].set(-1.0)
    w = w.at[..., 1].set(2.0)
    w = w.at[..., 2].set(-1.0)
    return w


def _reference_conv(x, w):
    """General Conv1d(k=3, padding=1, no bias) reference for validation."""
    N, C, L = x.shape
    x_pad = jnp.pad(x, ((0, 0), (0, 0), (1, 1)))
    return sum(
        jnp.einsum("oi,nil->nol", w[:, :, k], x_pad[:, :, k:k + L])
        for k in range(3)
    )


if __name__ == "__main__":
    k0, k1, k2 = jax.random.split(jax.random.PRNGKey(0), 3)

    # Test 1: shape implied by the module (batch=2, channels=4, length=16).
    N, C, L = 2, 4, 16
    x = jax.random.normal(k0, (N, C, L), dtype=jnp.float32)
    y = jax.block_until_ready(conv_block(x))
    assert y.shape == (N, C, L)
    assert jnp.allclose(y, _reference_conv(x, make_weights(C)), atol=1e-4, rtol=1e-4)

    # Test 2: batch-blocked path (BN > 1, single L tile).
    N2, C2, L2 = 4, 4, 16
    x2 = jax.random.normal(k1, (N2, C2, L2), dtype=jnp.float32)
    y2 = jax.block_until_ready(conv_block(x2))
    assert jnp.allclose(y2, _reference_conv(x2, make_weights(C2)), atol=1e-4, rtol=1e-4)

    # Test 3: tiled-L halo path (force a tiny block budget -> TL=256, nt=2).
    N3, C3, L3 = 2, 8, 512
    x3 = jax.random.normal(k2, (N3, C3, L3), dtype=jnp.float32)
    y3 = jax.block_until_ready(conv_block(x3, block_budget_bytes=8 * 1024))
    assert jnp.allclose(y3, _reference_conv(x3, make_weights(C3)), atol=1e-4, rtol=1e-4)

    print("KERNEL_OK")
</pallas_src>

<mosaic_0001>
module attributes {stable_mosaic.version = 11 : i64} {
  func.func @_conv1d_k3_kernel(%arg0: i32, %arg1: i32, %arg2: memref<1x4x128xf32, #tpu.memory_space<vmem>>, %arg3: memref<1x4x128xf32, #tpu.memory_space<vmem>>, %arg4: memref<1x384xf32, #tpu.memory_space<vmem>>) attributes {dimension_semantics = [#tpu.dimension_semantics<parallel>, #tpu.dimension_semantics<parallel>], iteration_bounds = array<i64: 2, 1>, scalar_prefetch = 0 : i64, scratch_operands = 1 : i64, tpu.core_type = #tpu.core_type<tc>, window_params = [{transform_indices = @transform_0, window_bounds = array<i64: 1, 4, 128>}, {transform_indices = @transform_1, window_bounds = array<i64: 1, 4, 128>}]} {
    %cst = arith.constant 0.000000e+00 : f32
    %0 = vector.broadcast %cst : f32 to vector<1x128xf32>
    %c0 = arith.constant 0 : index
    %c0_0 = arith.constant 0 : index
    %1 = vector.load %arg4[%c0, %c0_0] : memref<1x384xf32, #tpu.memory_space<vmem>>, vector<1x128xf32>
    tpu.vector_store %arg4[%c0, %c0_0], %0 {strides = array<i32>} : memref<1x384xf32, #tpu.memory_space<vmem>>, vector<1x128xf32>,
    %cst_1 = arith.constant 0.000000e+00 : f32
    %2 = vector.broadcast %cst_1 : f32 to vector<1x128xf32>
    %c0_2 = arith.constant 0 : index
    %c256 = arith.constant 256 : index
    %3 = vector.load %arg4[%c0_2, %c256] : memref<1x384xf32, #tpu.memory_space<vmem>>, vector<1x128xf32>
    tpu.vector_store %arg4[%c0_2, %c256], %2 {strides = array<i32>} : memref<1x384xf32, #tpu.memory_space<vmem>>, vector<1x128xf32>,
    %c0_i32 = arith.constant 0 : i32
    %c0_i32_3 = arith.constant 0 : i32
    %c128_i32 = arith.constant 128 : i32
    %4 = arith.muli %c0_i32_3, %c128_i32 : i32
    %5 = tpu.assume_multiple %4, 128 : i32
    %cst_4 = arith.constant 0.000000e+00 : f32
    %6 = vector.broadcast %cst_4 : f32 to vector<1x128xf32>
    %7 = arith.index_cast %c0_i32 : i32 to index
    %c0_5 = arith.constant 0 : index
    %8 = arith.index_cast %5 : i32 to index
    %9 = vector.load %arg2[%7, %c0_5, %8] : memref<1x4x128xf32, #tpu.memory_space<vmem>>, vector<1x4x128xf32>
    %10 = vector.shape_cast %9 : vector<1x4x128xf32> to vector<4x128xf32>
    %cst_6 = arith.constant dense<0.000000e+00> : vector<128xf32>
    %11 = vector.multi_reduction <add>, %10, %cst_6 [0] : vector<4x128xf32> to vector<128xf32>
    %12 = vector.shape_cast %11 : vector<128xf32> to vector<1x128xf32>
    %13 = arith.addf %6, %12 : vector<1x128xf32>
    %c128_i32_7 = arith.constant 128 : i32
    %14 = arith.addi %c128_i32_7, %5 : i32
    %c0_8 = arith.constant 0 : index
    %15 = arith.index_cast %14 : i32 to index
    %16 = vector.load %arg4[%c0_8, %15] : memref<1x384xf32, #tpu.memory_space<vmem>>, vector<1x128xf32>
    tpu.vector_store %arg4[%c0_8, %15], %13 {strides = array<i32>} : memref<1x384xf32, #tpu.memory_space<vmem>>, vector<1x128xf32>,
    %c1_i32 = arith.constant 1 : i32
    %c0_i32_9 = arith.constant 0 : i32
    %c128_i32_10 = arith.constant 128 : i32
    %17 = arith.muli %c0_i32_9, %c128_i32_10 : i32
    %18 = tpu.assume_multiple %17, 128 : i32
    %c0_11 = arith.constant 0 : index
    %19 = arith.index_cast %18 : i32 to index
    %20 = vector.load %arg4[%c0_11, %19] : memref<1x384xf32, #tpu.memory_space<vmem>>, vector<1x384xf32>
    %21 = vector.extract_strided_slice %20 {offsets = [0, 128], sizes = [1, 128], strides = [1, 1]} : vector<1x384xf32> to vector<1x128xf32>
    %22 = vector.extract_strided_slice %20 {offsets = [0, 127], sizes = [1, 128], strides = [1, 1]} : vector<1x384xf32> to vector<1x128xf32>
    %23 = vector.extract_strided_slice %20 {offsets = [0, 129], sizes = [1, 128], strides = [1, 1]} : vector<1x384xf32> to vector<1x128xf32>
    %cst_12 = arith.constant 2.000000e+00 : f32
    %24 = vector.broadcast %cst_12 : f32 to vector<1x128xf32>
    %25 = arith.mulf %24, %21 : vector<1x128xf32>
    %26 = arith.subf %25, %22 : vector<1x128xf32>
    %27 = arith.subf %26, %23 : vector<1x128xf32>
    %28 = vector.shape_cast %27 : vector<1x128xf32> to vector<1x128xf32>
    %29 = vector.broadcast %28 : vector<1x128xf32> to vector<4x128xf32>
    %30 = arith.index_cast %c0_i32 : i32 to index
    %c0_13 = arith.constant 0 : index
    %31 = arith.index_cast %18 : i32 to index
    %32 = vector.load %arg3[%30, %c0_13, %31] : memref<1x4x128xf32, #tpu.memory_space<vmem>>, vector<1x4x128xf32>
    %33 = vector.shape_cast %32 : vector<1x4x128xf32> to vector<4x128xf32>
    %34 = vector.shape_cast %29 : vector<4x128xf32> to vector<1x4x128xf32>
    tpu.vector_store %arg3[%30, %c0_13, %31], %34 {strides = array<i32>} : memref<1x4x128xf32, #tpu.memory_space<vmem>>, vector<1x4x128xf32>,
    %c1_i32_14 = arith.constant 1 : i32
    %c1_i32_15 = arith.constant 1 : i32
    return
  }
  func.func @transform_0(%arg0: i32, %arg1: i32) -> (i32, i32, i32) {
    %c0_i32 = arith.constant 0 : i32
    %c0_i32_0 = arith.constant 0 : i32
    return %arg0, %c0_i32, %arg1 : i32, i32, i32
  }
  func.func @transform_1(%arg0: i32, %arg1: i32) -> (i32, i32, i32) {
    %c0_i32 = arith.constant 0 : i32
    %c0_i32_0 = arith.constant 0 : i32
    return %arg0, %c0_i32, %arg1 : i32, i32, i32
  }
}

</mosaic_0001>

<llo_original>
// kernel: tpu_custom_call.1
$region0: #{tpu_custom_call.1}
  #allocation0 [shape = 'u32[]', space=smem, size = 0x4, offset = 0x4, fixed_abs, tag = 'smem constant byte address 0x4 - core index']
  #allocation1 [shape = 'u32[144,128]{1,0:T(1,128)}', space=vmem, size = 0x12000, scoped, tag = 'internal scratch']
  #allocation2 [shape = 'f32[1,384]{1,0:T(1,128)}', space=vmem, size = 0x600, scoped, tag = 'scratch operand']
  %s0 = inlined_call_operand.hbm [shape: f32[2,4,128], index: 0, kind: input, shape index: {}]
  %s1 = inlined_call_operand.hbm [shape: f32[2,4,128], index: 1, kind: output, shape index: {}]
  %s2 = sld [smem:[#allocation0]]
  $region41: #{tpu_custom_call.1} parent=0
    _
  %s4 = ssub.s32 1, %s2
  %s5 = scalar_select 0, %s4, %s2
  $region1: #{tpu_custom_call.1} parent=0
    #allocation3 [shape = 'u8[4096]{0}', space=vmem, size = 0x1000, scoped, tag = 'input window, operand 0']
    #allocation4 [shape = 's32[2]{0}', space=sflag, size = 0x8, scoped, tag = 'scoped memory for tpu_custom_call.1']
    #allocation5 [shape = 's32[2]{0}', space=sflag, size = 0x8, scoped, tag = 'scoped memory for tpu_custom_call.1']
    #allocation6 [shape = 'u8[4096]{0}', space=vmem, size = 0x1000, scoped, tag = 'output window, operand 0']
    %6 = vsyncpa [#allocation4], 0
    %s7 = scalar_lea.sflag [#allocation4], 1
    %8 = vsyncpa %s7, 0
    %9 = vsyncpa [#allocation5], 0
    %s10 = scalar_lea.sflag [#allocation5], 1
    %11 = vsyncpa %s10, 0
    loop: start=0, step=1, limit=4
    $region2: #{tpu_custom_call.1} parent=1 // loop_pre_header
      _
    $region3: #{tpu_custom_call.1} parent=1 // loop_header
      %s13 = sphi 0, %s17
      %p14 = scmp.ge.s32.totalorder %s13, 4
      %s20 = sphi 0, %s32
      %s21 = sphi 0, %s28
      %s22 = sphi 0, %s20
      %s23 = sphi 0, %s21
      %s24 = sphi 0, %s22
      %s25 = sphi 0, %s23
      %s37 = sphi 0, %s39
      %s40 = sphi 0, %s37
      %s41 = sphi 0, %s40
      %s57 = sphi 0, %s41
      %s65 = sphi 0, %s67
      %s68 = sphi 0, %s65
      %s69 = sphi 0, %s68
      %s85 = sphi 0, %s69
    $region4: #{tpu_custom_call.1} parent=1 // loop_header_branch
      %16 = sbr.rel (%p14) target = $region8
    $region5: #{tpu_custom_call.1} parent=1 // loop_body
      %s18 = ssub.s32 %s13, 1
      %s19 = ssub.s32 %s13, 2
      %s26 = sadd.s32 1, %s21
      %p27 = scmp.ge.s32.totalorder %s26, 1
      %s28 = scalar_select %p27, 0, %s26
      %s29 = sadd.s32 1, %s20
      %s30 = scalar_select %p27, %s29, %s20
      %p31 = scmp.ge.s32.totalorder %s30, 2
      %s32 = scalar_select %p31, 0, %s30
      %s33 = ssub.s32 %s20, %s32
      %s34 = ssub.s32 %s21, %s28
      %s35 = sor.u32 %s33, %s34
      %p36 = scmp.eq.s32.totalorder %s35, 0
      %s38 = sadd.s32 %s37, 1
      %s39 = scalar_select %p36, %s37, %s38
      %p42 = pneg %p36
      %p43 = scmp.eq.s32.totalorder %s13, 1
      %p44 = por %p42, %p43
      %p45 = scmp.ne.s32.totalorder %s37, %s40
      %p46 = scmp.eq.s32.totalorder %s13, 0
      %p47 = por %p45, %p46
      %p48 = scmp.ne.s32.totalorder %s37, %s40
      %p49 = scmp.eq.s32.totalorder %s18, 1
      %p50 = por %p48, %p49
      %p51 = scmp.ne.s32.totalorder %s40, %s41
      %p52 = scmp.eq.s32.totalorder %s18, 0
      %p53 = por %p51, %p52
      %p54 = scmp.ne.s32.totalorder %s40, %s41
      %p55 = scmp.eq.s32.totalorder %s19, 1
      %p56 = por %p54, %p55
      %p58 = scmp.ne.s32.totalorder %s41, %s57
      %p59 = scmp.eq.s32.totalorder %s19, 0
      %p60 = por %p58, %p59
      %s61 = ssub.s32 %s20, %s32
      %s62 = ssub.s32 %s21, %s28
      %s63 = sor.u32 %s61, %s62
      %p64 = scmp.eq.s32.totalorder %s63, 0
      %s66 = sadd.s32 %s65, 1
      %s67 = scalar_select %p64, %s65, %s66
      %p70 = pneg %p64
      %p71 = scmp.eq.s32.totalorder %s13, 1
      %p72 = por %p70, %p71
      %p73 = scmp.ne.s32.totalorder %s65, %s68
      %p74 = scmp.eq.s32.totalorder %s13, 0
      %p75 = por %p73, %p74
      %p76 = scmp.ne.s32.totalorder %s65, %s68
      %p77 = scmp.eq.s32.totalorder %s18, 1
      %p78 = por %p76, %p77
      %p79 = scmp.ne.s32.totalorder %s68, %s69
      %p80 = scmp.eq.s32.totalorder %s18, 0
      %p81 = por %p79, %p80
      %p82 = scmp.ne.s32.totalorder %s68, %s69
      %p83 = scmp.eq.s32.totalorder %s19, 1
      %p84 = por %p82, %p83
      %p86 = scmp.ne.s32.totalorder %s69, %s85
      %p87 = scmp.eq.s32.totalorder %s19, 0
      %p88 = por %p86, %p87
      %p89 = scmp.le.s32.totalorder 1, %s13
      %p90 = scmp.lt.s32.totalorder %s13, 3
      %p91 = pnand %p89, %p90
      %p92 = pneg %p91
      // Predicated region
      $region9: #{tpu_custom_call.1} parent=5 // pred_check
        _
      $region10: #{tpu_custom_call.1} parent=5 // pred_check_branch
        %94 = sbr.rel (%p91) target = $region12
      $region11: #{tpu_custom_call.1} parent=5 // pred_region
        %s95 = ssub.s32 %s13, 1
      $region12: #{tpu_custom_call.1} parent=5 // pred_fallthru
        _
      %p96 = scmp.lt.s32.totalorder %s13, 2
      // Predicated region
      $region13: #{tpu_custom_call.1} parent=5 // pred_check
        %p97 = pneg %p96
      $region14: #{tpu_custom_call.1} parent=5 // pred_check_branch
        %99 = sbr.rel (%p97) target = $region16
      $region15: #{tpu_custom_call.1} parent=5 // pred_region
        // Predicated region
        $region17: #{tpu_custom_call.1} parent=15 // pred_check
          %p100 = pneg %p47
        $region18: #{tpu_custom_call.1} parent=15 // pred_check_branch
          %102 = sbr.rel (%p100) target = $region20
        $region19: #{tpu_custom_call.1} parent=15 // pred_region
          %s103 = sand.u32 %s37, 1
          %s104 = scalar_lea.sflag [#allocation4], %s103
          %s105 = sand.u32 %s37, 1
          %s106 = smul.addr %s105, 4
          %s107 = scalar_lea.vmem [#allocation3], %s106
          %s109 = ssub.s32 64, 64
          %110 = vsyncadd %s104, %s109
          %s111 = sadd.s32 %s21, %s20
          %s112 = smul.addr %s111, 64
          %s113 = scalar_lea.hbm %s0, %s112
          %s115 = sshll.u32 %s107, 4
          %s116 = int_to_ptr.vmem [resolvable:$true] %s115
          %118 = dma.hbm_to_vmem [thread:$0]  %s113, 64, %s116, %s104
        $region20: #{tpu_custom_call.1} parent=15 // pred_fallthru
          _
      $region16: #{tpu_custom_call.1} parent=5 // pred_fallthru
        _
      %p119 = scmp.le.s32.totalorder 1, %s13
      %p120 = scmp.lt.s32.totalorder %s13, 3
      %p121 = pnand %p119, %p120
      %p122 = pneg %p121
      // Predicated region
      $region21: #{tpu_custom_call.1} parent=5 // pred_check
        _
      $region22: #{tpu_custom_call.1} parent=5 // pred_check_branch
        %124 = sbr.rel (%p121) target = $region24
      $region23: #{tpu_custom_call.1} parent=5 // pred_region
        %s125 = ssub.s32 %s13, 1
        %s126 = sand.u32 %s40, 1
        %s127 = scalar_lea.sflag [#allocation4], %s126
        %s128 = sand.u32 %s40, 1
        %s129 = smul.addr %s128, 4
        %s130 = scalar_lea.vmem [#allocation3], %s129
        // Predicated region
        $region25: #{tpu_custom_call.1} parent=23 // pred_check
          %p131 = pneg %p53
        $region26: #{tpu_custom_call.1} parent=23 // pred_check_branch
          %133 = sbr.rel (%p131) target = $region28
        $region27: #{tpu_custom_call.1} parent=23 // pred_region
          %134 = dma.done %s127, 64
        $region28: #{tpu_custom_call.1} parent=23 // pred_fallthru
          _
        %s135 = sand.u32 %s40, 1
        %s136 = scalar_lea.sflag [#allocation4], %s135
        %s137 = sand.u32 %s40, 1
        %s138 = smul.addr %s137, 4
        %s139 = scalar_lea.vmem [#allocation3], %s138
        %p140 = pneg %p53
        %p141 = pneg %p50
        %p142 = pneg %p81
        %p143 = pneg %p78
        %s144 = sand.u32 %s68, 1
        %s145 = scalar_lea.sflag [#allocation5], %s144
        %s146 = sand.u32 %s68, 1
        %s147 = smul.addr %s146, 4
        %s148 = scalar_lea.vmem [#allocation6], %s147
        %v149 = vlaneseq
        %vm150 = vcmp.ge.s32.totalorder %v149, 0
        %vm151 = vcmp.lt.s32.totalorder %v149, 128
        %vm152 = vmand %vm150, %vm151
        %153 = vst.msk [vmem:[#allocation2] sm:$0x1] %vm152, 0.0
        %154 = vst.msk [vmem:[#allocation2 + $0x2] sm:$0x1] %vm152, 0.0
        %v155 = vld [vmem:[%s130] sm:$0xf]
        %vm156 = vcmask 1043456
        %v157 = vsel %vm156, %v155, 0.0
        %v158 = vrot.slane %v157, 4
        %v159 = vadd.f32 %v157, %v158
        %v160 = vrot.slane %v159, 2
        %v161 = vadd.f32 %v159, %v160
        %v162 = vrot.slane %v161, 1
        %v163 = vadd.f32 %v161, %v162
        %v164 = vadd.f32 %v163, 0.0
        %s165 = sadd.s32 0, 128
        %s166 = sshra.s32 %s165, 7
        %s167 = sand.u32 %s165, 127
        %s168 = scalar_lea.vmem [#allocation2], %s166
        %169 = vst.msk [vmem:[%s168] sm:$0x1] %vm152, %v164
        %v170 = vld [vmem:[#allocation2] sm:$0x7]
        %v172 = vrot.slane %v170, 1
        %v174 = vmul.f32 %v172, 2.0
        %175 = vrot.lane.b32.xlu0 %v170, 1
        %v176 = vpop.permute.xlu0 %175
        %v177 = vrot.slane %v176, 1
        %vm178 = vcmask 7168
        %v179 = vsel %vm178, %v176, %v177
        %v181 = vsub.f32 %v174, %v179
        %182 = vrot.lane.b32.xlu0 %v170, 127
        %v183 = vpop.permute.xlu0 %182
        %v184 = vrot.slane %v183, 1
        %v185 = vrot.slane %v183, 2
        %vm186 = vcmask 1039360
        %v187 = vsel %vm186, %v184, %v185
        %v189 = vsub.f32 %v181, %v187
        %v191 = vlaneseq
        %v192 = vshrl.u32 %v191, 7
        %v193 = vsub.s32 0, %v192
        %v194 = vrot.slane %v189, %v193
        %196 = vst [vmem:[%s148] sm:$0xf] %v194
        %s197 = sand.u32 %s68, 1
        %s198 = scalar_lea.sflag [#allocation5], %s197
        %s199 = sand.u32 %s68, 1
        %s200 = smul.addr %s199, 4
        %s201 = scalar_lea.vmem [#allocation6], %s200
        // Predicated region
        $region29: #{tpu_custom_call.1} parent=23 // pred_check
          %p202 = pneg %p78
        $region30: #{tpu_custom_call.1} parent=23 // pred_check_branch
          %204 = sbr.rel (%p202) target = $region32
        $region31: #{tpu_custom_call.1} parent=23 // pred_region
          %s206 = ssub.s32 64, 64
          %207 = vsyncadd %s198, %s206
          %s208 = sadd.s32 %s23, %s22
          %s209 = smul.addr %s208, 64
          %s210 = scalar_lea.hbm %s1, %s209
          %s212 = sshll.u32 %s201, 4
          %s213 = int_to_ptr.vmem [resolvable:$true] %s212
          %215 = dma.vmem_to_hbm [thread:$0]  %s213, 64, %s210, %s198
        $region32: #{tpu_custom_call.1} parent=23 // pred_fallthru
          _
      $region24: #{tpu_custom_call.1} parent=5 // pred_fallthru
        _
      %p216 = scmp.le.s32.totalorder 2, %s13
      // Predicated region
      $region33: #{tpu_custom_call.1} parent=5 // pred_check
        %p217 = pneg %p216
      $region34: #{tpu_custom_call.1} parent=5 // pred_check_branch
        %219 = sbr.rel (%p217) target = $region36
      $region35: #{tpu_custom_call.1} parent=5 // pred_region
        %s220 = ssub.s32 %s13, 2
        // Predicated region
        $region37: #{tpu_custom_call.1} parent=35 // pred_check
          %p221 = pneg %p84
        $region38: #{tpu_custom_call.1} parent=35 // pred_check_branch
          %223 = sbr.rel (%p221) target = $region40
        $region39: #{tpu_custom_call.1} parent=35 // pred_region
          %s224 = sand.u32 %s69, 1
          %s225 = scalar_lea.sflag [#allocation5], %s224
          %s226 = sand.u32 %s69, 1
          %s227 = smul.addr %s226, 4
          %s228 = scalar_lea.vmem [#allocation6], %s227
          %229 = dma.done %s225, 64
        $region40: #{tpu_custom_call.1} parent=35 // pred_fallthru
          _
      $region36: #{tpu_custom_call.1} parent=5 // pred_fallthru
        _
    $region6: #{tpu_custom_call.1} parent=1 // loop_footer
      %s17 = sadd.s32 1, %s13
    $region7: #{tpu_custom_call.1} parent=1 // loop_footer_branch
      %12 = sbr.rel target = $region3
    $region8: #{tpu_custom_call.1} parent=1 // loop_exit
      _
    %230 = vsyncpa [#allocation4], 1
    %s231 = scalar_lea.sflag [#allocation4], 1
    %232 = vsyncpa %s231, 1
    %233 = vsyncpa [#allocation5], 1
    %s234 = scalar_lea.sflag [#allocation5], 1
    %235 = vsyncpa %s234, 1

</llo_original>
